<compile_context>
chip_gen: v7x
topology: tpu7x:2x2x1
jax: 0.10.0
libtpu: 0.0.40
codegen_flags: <defaults>
</compile_context>

<pallas_src>
import functools

import jax
import jax.numpy as jnp
import numpy as np
from jax import lax
from jax.experimental import pallas as pl
from jax.experimental.pallas import tpu as pltpu

HIDDEN = 32
OUTPUT_SIZE = 40
MAX_LENGTH = 10

LANES = 128          # lane width of activations / 128-padded weights
WIDE = 256           # lane width of the packed weight slab (fits 6H = 192 GRU cols)
ENC_PAD = 128        # encoder rows padded to 128 so attn_w @ enc needs no lane slice
NEG_INF = -1e30

# Row offsets inside the packed weight slab (all multiples of 8 sublanes).
R_EMB = 0                                # embedding table (V, H)      @ lanes [0:H]
R_ATTN = R_EMB + OUTPUT_SIZE             # attn weight      (2H, L)    @ lanes [0:L]
R_COMB = R_ATTN + 2 * HIDDEN             # combine weight   (2H, H)    @ lanes [0:H]
R_GRU = R_COMB + 2 * HIDDEN              # block-diag GRU   (2H, 6H)   @ lanes [0:6H]
R_OUT = R_GRU + 2 * HIDDEN               # out weight       (H, V)     @ lanes [0:V]
SLAB_ROWS = R_OUT + HIDDEN               # 264


def attn_decoder_kernel(tok_ref, h0_ref, slab_ref, bias_ref, enc_ref,
                        out_ref, h_scr):
    H, V, L = HIDDEN, OUTPUT_SIZE, MAX_LENGTH
    t = pl.program_id(0)

    # Hidden state lives in a VMEM scratch for the whole decode loop.
    @pl.when(t == 0)
    def _():
        h_scr[...] = h0_ref[...]

    h_row = h_scr[...]                              # (1, 128), lanes [0:H] valid
    h = h_row[:, 0:H]                               # (1, H)

    # Embedding lookup: the table is resident in the slab; gather one row.
    tok = tok_ref[t]
    emb_row = slab_ref[pl.ds(tok, 1), :]            # (1, WIDE)
    e = emb_row[:, 0:H]                             # (1, H)
    # TODO(synk): nn.Dropout(p=0.1) omitted (eval-mode identity; no RNG state here).

    lane = lax.broadcasted_iota(jnp.int32, (1, LANES), 1)

    # ---- attention weights: softmax(Linear(cat(e, h))) over MAX_LENGTH --------
    xcat1 = jnp.concatenate([e, h], axis=1)                       # (1, 2H)
    w_attn = slab_ref[R_ATTN:R_ATTN + 2 * H, 0:LANES]             # (2H, 128)
    attn_logits = (jnp.dot(xcat1, w_attn, preferred_element_type=jnp.float32)
                   + bias_ref[0:1, 0:LANES])                      # (1, 128)
    attn_logits = jnp.where(lane < L, attn_logits, NEG_INF)
    m = jnp.max(attn_logits, axis=1, keepdims=True)
    p = jnp.exp(attn_logits - m)
    attn_w = p * pl.reciprocal(jnp.sum(p, axis=1, keepdims=True), approx=False)

    # ---- attn_applied = attn_w @ encoder_outputs (rows zero-padded to 128) ----
    attn_applied = jnp.dot(attn_w, enc_ref[...],
                           preferred_element_type=jnp.float32)    # (1, H)

    # ---- attn_combine(cat(e, attn_applied)) + ReLU ----------------------------
    xcat2 = jnp.concatenate([e, attn_applied], axis=1)            # (1, 2H)
    w_comb = slab_ref[R_COMB:R_COMB + 2 * H, 0:LANES]             # (2H, 128)
    x = jnp.maximum(jnp.dot(xcat2, w_comb, preferred_element_type=jnp.float32)
                    + bias_ref[1:2, 0:LANES], 0.0)                # (1, 128)
    x = x[:, 0:H]                                                 # (1, H)

    # ---- GRU cell: one block-diagonal matmul yields [gi | gh] -----------------
    xh = jnp.concatenate([x, h], axis=1)                          # (1, 2H)
    w_gru = slab_ref[R_GRU:R_GRU + 2 * H, :]                      # (2H, 256)
    g = (jnp.dot(xh, w_gru, preferred_element_type=jnp.float32)
         + bias_ref[2:3, :])                                      # (1, 256)
    i_r, i_z, i_n = g[:, 0:H], g[:, H:2 * H], g[:, 2 * H:3 * H]
    h_r, h_z, h_n = g[:, 3 * H:4 * H], g[:, 4 * H:5 * H], g[:, 5 * H:6 * H]
    r = jax.nn.sigmoid(i_r + h_r)
    z = jax.nn.sigmoid(i_z + h_z)
    n = jnp.tanh(i_n + r * h_n)
    h_new = (1.0 - z) * n + z * h                                 # (1, H)
    h_new_row = jnp.concatenate(
        [h_new, jnp.zeros((1, LANES - H), jnp.float32)], axis=1)  # (1, 128)
    h_scr[...] = h_new_row                                        # carry to step t+1

    # ---- output projection + log_softmax over the vocab -----------------------
    w_out = slab_ref[R_OUT:R_OUT + H, 0:LANES]                    # (H, 128)
    logits = (jnp.dot(h_new, w_out, preferred_element_type=jnp.float32)
              + bias_ref[3:4, 0:LANES])                           # (1, 128)
    logits = jnp.where(lane < V, logits, NEG_INF)
    lm = jnp.max(logits, axis=1, keepdims=True)
    shifted = logits - lm
    lse = jnp.log(jnp.sum(jnp.exp(shifted), axis=1, keepdims=True))
    logp = shifted - lse                                          # (1, 128)

    # ---- single lane-dense packed store: rows = [logp | h_new | attn_w] -------
    packed = jnp.concatenate([logp, h_new_row, attn_w], axis=0)   # (3, 128)
    out_ref[...] = packed.reshape(1, 3, LANES)


def _build_decoder_call(T):
    step_flops = 2 * (2 * HIDDEN * LANES            # attn matmul
                      + ENC_PAD * HIDDEN            # attn_applied
                      + 2 * HIDDEN * LANES          # combine
                      + 2 * HIDDEN * WIDE           # block-diag GRU
                      + HIDDEN * LANES)             # out projection
    cost = pl.CostEstimate(
        flops=T * step_flops,
        transcendentals=T * (2 * LANES + 3 * HIDDEN + 4),
        bytes_accessed=((SLAB_ROWS + 8) * WIDE + ENC_PAD * HIDDEN + LANES) * 4
                       + T * (4 + 3 * LANES * 4),
    )
    return pl.pallas_call(
        attn_decoder_kernel,
        grid=(T,),
        in_specs=[
            pl.BlockSpec(memory_space=pltpu.MemorySpace.SMEM),   # tokens (T,)
            pl.BlockSpec(memory_space=pltpu.MemorySpace.VMEM),   # h0 (1, 128)
            pl.BlockSpec(memory_space=pltpu.MemorySpace.VMEM),   # weight slab, resident
            pl.BlockSpec(memory_space=pltpu.MemorySpace.VMEM),   # bias slab, resident
            pl.BlockSpec(memory_space=pltpu.MemorySpace.VMEM),   # padded encoder outputs
        ],
        out_specs=pl.BlockSpec((1, 3, LANES), lambda t: (t, 0, 0)),
        out_shape=jax.ShapeDtypeStruct((T, 3, LANES), jnp.float32),
        scratch_shapes=[pltpu.VMEM((1, LANES), jnp.float32)],     # hidden-state carry
        compiler_params=pltpu.CompilerParams(
            dimension_semantics=("arbitrary",)),                  # sequential time axis
        cost_estimate=cost,
    )


@jax.jit
def attn_decoder_forward_seq(tokens, hidden0, encoder_outputs, slab, bias):
    """Run T decoder steps fully inside one kernel (teacher-forced token sequence)."""
    T = tokens.shape[0]
    h0 = jnp.zeros((1, LANES), jnp.float32).at[:, :HIDDEN].set(
        hidden0.reshape(1, HIDDEN).astype(jnp.float32))
    enc_pad = jnp.zeros((ENC_PAD, HIDDEN), jnp.float32).at[:MAX_LENGTH, :].set(
        encoder_outputs.astype(jnp.float32))
    out = _build_decoder_call(T)(tokens.astype(jnp.int32), h0, slab, bias, enc_pad)
    logp_seq = out[:, 0, :OUTPUT_SIZE]
    h_seq = out[:, 1, :HIDDEN]
    attn_seq = out[:, 2, :MAX_LENGTH]
    return logp_seq, h_seq, attn_seq


def attn_decoder_forward(token, hidden, encoder_outputs, slab, bias):
    """Single step matching AttnDecoderRNN.forward(input, hidden, encoder_outputs)."""
    tokens = jnp.asarray(token, jnp.int32).reshape((1,))
    logp, h_seq, attn_w = attn_decoder_forward_seq(
        tokens, hidden, encoder_outputs, slab, bias)
    return logp, h_seq[-1].reshape(1, 1, HIDDEN), attn_w


# --------------------------- parameter packing --------------------------------
def pack_params(params):
    H, V, L = HIDDEN, OUTPUT_SIZE, MAX_LENGTH
    slab = jnp.zeros((SLAB_ROWS, WIDE), jnp.float32)
    slab = slab.at[R_EMB:R_EMB + V, 0:H].set(params["emb"])
    slab = slab.at[R_ATTN:R_ATTN + 2 * H, 0:L].set(params["w_attn"])
    slab = slab.at[R_COMB:R_COMB + 2 * H, 0:H].set(params["w_comb"])
    slab = slab.at[R_GRU:R_GRU + H, 0:3 * H].set(params["w_ih"])          # block-diag
    slab = slab.at[R_GRU + H:R_GRU + 2 * H, 3 * H:6 * H].set(params["w_hh"])
    slab = slab.at[R_OUT:R_OUT + H, 0:V].set(params["w_out"])

    bias = jnp.zeros((8, WIDE), jnp.float32)
    bias = bias.at[0, 0:L].set(params["b_attn"][0])
    bias = bias.at[1, 0:H].set(params["b_comb"][0])
    bias = bias.at[2, 0:3 * H].set(params["b_ih"][0])
    bias = bias.at[2, 3 * H:6 * H].set(params["b_hh"][0])
    bias = bias.at[3, 0:V].set(params["b_out"][0])
    return slab, bias


# ------------------------------ pure-JAX reference ----------------------------
def reference_step(token, h, encoder_outputs, params):
    H = HIDDEN
    embedded = params["emb"][token].reshape(1, H)
    cat1 = jnp.concatenate([embedded, h], axis=1)
    attn_w = jax.nn.softmax(cat1 @ params["w_attn"] + params["b_attn"], axis=1)
    attn_applied = attn_w @ encoder_outputs
    cat2 = jnp.concatenate([embedded, attn_applied], axis=1)
    x = jnp.maximum(cat2 @ params["w_comb"] + params["b_comb"], 0.0)
    gi = x @ params["w_ih"] + params["b_ih"]
    gh = h @ params["w_hh"] + params["b_hh"]
    i_r, i_z, i_n = gi[:, :H], gi[:, H:2 * H], gi[:, 2 * H:]
    h_r, h_z, h_n = gh[:, :H], gh[:, H:2 * H], gh[:, 2 * H:]
    r = jax.nn.sigmoid(i_r + h_r)
    z = jax.nn.sigmoid(i_z + h_z)
    n = jnp.tanh(i_n + r * h_n)
    h_new = (1.0 - z) * n + z * h
    logp = jax.nn.log_softmax(h_new @ params["w_out"] + params["b_out"], axis=1)
    return logp, h_new, attn_w


def reference_forward_seq(tokens, hidden0, encoder_outputs, params):
    h = hidden0.reshape(1, HIDDEN)
    logps, hs, attns = [], [], []
    for tok in np.asarray(tokens):
        logp, h, attn_w = reference_step(int(tok), h, encoder_outputs, params)
        logps.append(logp), hs.append(h), attns.append(attn_w)
    return (jnp.concatenate(logps, 0), jnp.concatenate(hs, 0),
            jnp.concatenate(attns, 0))


def init_params(key):
    ks = jax.random.split(key, 10)
    s = 0.1
    return {
        "emb":    s * jax.random.normal(ks[0], (OUTPUT_SIZE, HIDDEN), jnp.float32),
        "w_attn": s * jax.random.normal(ks[1], (2 * HIDDEN, MAX_LENGTH), jnp.float32),
        "b_attn": s * jax.random.normal(ks[2], (1, MAX_LENGTH), jnp.float32),
        "w_comb": s * jax.random.normal(ks[3], (2 * HIDDEN, HIDDEN), jnp.float32),
        "b_comb": s * jax.random.normal(ks[4], (1, HIDDEN), jnp.float32),
        "w_ih":   s * jax.random.normal(ks[5], (HIDDEN, 3 * HIDDEN), jnp.float32),
        "b_ih":   s * jax.random.normal(ks[6], (1, 3 * HIDDEN), jnp.float32),
        "w_hh":   s * jax.random.normal(ks[7], (HIDDEN, 3 * HIDDEN), jnp.float32),
        "b_hh":   s * jax.random.normal(ks[8], (1, 3 * HIDDEN), jnp.float32),
        "w_out":  s * jax.random.normal(ks[9], (HIDDEN, OUTPUT_SIZE), jnp.float32),
        "b_out":  jnp.zeros((1, OUTPUT_SIZE), jnp.float32),
    }


if __name__ == "__main__":
    key = jax.random.PRNGKey(0)
    kp, kh, ke, kt = jax.random.split(key, 4)

    params = init_params(kp)
    slab, bias = pack_params(params)                 # built once, reused every call

    T = 6
    tokens = jax.random.randint(kt, (T,), 0, OUTPUT_SIZE, dtype=jnp.int32)
    hidden0 = 0.1 * jax.random.normal(kh, (1, 1, HIDDEN), jnp.float32)
    encoder_outputs = 0.1 * jax.random.normal(ke, (MAX_LENGTH, HIDDEN), jnp.float32)

    # Multi-step fused decode (weights resident, hidden carried in VMEM scratch).
    logp_seq, h_seq, attn_seq = attn_decoder_forward_seq(
        tokens, hidden0, encoder_outputs, slab, bias)
    jax.block_until_ready((logp_seq, h_seq, attn_seq))

    logp_r, h_r, attn_r = reference_forward_seq(tokens, hidden0, encoder_outputs, params)
    assert np.allclose(np.asarray(logp_seq), np.asarray(logp_r), atol=1e-4)
    assert np.allclose(np.asarray(h_seq), np.asarray(h_r), atol=1e-4)
    assert np.allclose(np.asarray(attn_seq), np.asarray(attn_r), atol=1e-4)

    # Single-step path (exact AttnDecoderRNN.forward semantics).
    logp1, h1, attn1 = attn_decoder_forward(tokens[0], hidden0, encoder_outputs, slab, bias)
    jax.block_until_ready((logp1, h1, attn1))
    logp1_r, h1_r, attn1_r = reference_step(int(tokens[0]), hidden0.reshape(1, HIDDEN),
                                            encoder_outputs, params)
    assert np.allclose(np.asarray(logp1), np.asarray(logp1_r), atol=1e-4)
    assert np.allclose(np.asarray(h1).reshape(1, HIDDEN), np.asarray(h1_r), atol=1e-4)
    assert np.allclose(np.asarray(attn1), np.asarray(attn1_r), atol=1e-4)

    print("KERNEL_OK")
</pallas_src>

<mosaic_0001>
module attributes {stable_mosaic.version = 11 : i64} {
  func.func @attn_decoder_kernel(%arg0: i32, %arg1: memref<6xi32, #tpu.memory_space<smem>>, %arg2: memref<1x128xf32, #tpu.memory_space<vmem>>, %arg3: memref<264x256xf32, #tpu.memory_space<vmem>>, %arg4: memref<8x256xf32, #tpu.memory_space<vmem>>, %arg5: memref<128x32xf32, #tpu.memory_space<vmem>>, %arg6: memref<1x3x128xf32, #tpu.memory_space<vmem>>, %arg7: memref<1x128xf32, #tpu.memory_space<vmem>>) attributes {dimension_semantics = [#tpu.dimension_semantics<arbitrary>], iteration_bounds = array<i64: 6>, scalar_prefetch = 0 : i64, scratch_operands = 1 : i64, tpu.core_type = #tpu.core_type<tc>, window_params = [{transform_indices = @transform_0, window_bounds = array<i64: 6>}, {pipeline_mode = #tpu.pipeline_mode<synchronous>, transform_indices = @transform_1, window_bounds = array<i64: 1, 128>}, {pipeline_mode = #tpu.pipeline_mode<synchronous>, transform_indices = @transform_2, window_bounds = array<i64: 264, 256>}, {pipeline_mode = #tpu.pipeline_mode<synchronous>, transform_indices = @transform_3, window_bounds = array<i64: 8, 256>}, {pipeline_mode = #tpu.pipeline_mode<synchronous>, transform_indices = @transform_4, window_bounds = array<i64: 128, 32>}, {transform_indices = @transform_5, window_bounds = array<i64: 1, 3, 128>}]} {
    %c0_i32 = arith.constant 0 : i32
    %0 = arith.cmpi eq, %arg0, %c0_i32 : i32
    %1 = arith.extui %0 : i1 to i32
    %c0_i32_0 = arith.constant 0 : i32
    %2 = arith.cmpi ne, %1, %c0_i32_0 : i32
    scf.if %2 {
      %c0_34 = arith.constant 0 : index
      %c0_35 = arith.constant 0 : index
      %95 = vector.load %arg2[%c0_34, %c0_35] : memref<1x128xf32, #tpu.memory_space<vmem>>, vector<1x128xf32>
      %c0_36 = arith.constant 0 : index
      %c0_37 = arith.constant 0 : index
      %96 = vector.load %arg7[%c0_36, %c0_37] : memref<1x128xf32, #tpu.memory_space<vmem>>, vector<1x128xf32>
      tpu.vector_store %arg7[%c0_36, %c0_37], %95 {strides = array<i32>} : memref<1x128xf32, #tpu.memory_space<vmem>>, vector<1x128xf32>,
    } else {
    }
    %c0 = arith.constant 0 : index
    %c0_1 = arith.constant 0 : index
    %3 = vector.load %arg7[%c0, %c0_1] : memref<1x128xf32, #tpu.memory_space<vmem>>, vector<1x128xf32>
    %4 = vector.extract_strided_slice %3 {offsets = [0, 0], sizes = [1, 32], strides = [1, 1]} : vector<1x128xf32> to vector<1x32xf32>
    %5 = arith.index_cast %arg0 : i32 to index
    %6 = memref.load %arg1[%5] : memref<6xi32, #tpu.memory_space<smem>>
    %7 = arith.index_cast %6 : i32 to index
    %c0_2 = arith.constant 0 : index
    %8 = vector.load %arg3[%7, %c0_2] : memref<264x256xf32, #tpu.memory_space<vmem>>, vector<1x256xf32>
    %9 = vector.extract_strided_slice %8 {offsets = [0, 0], sizes = [1, 32], strides = [1, 1]} : vector<1x256xf32> to vector<1x32xf32>
    %10 = tpu.iota {dimensions = array<i32: 1>} : vector<1x128xi32>
    %11 = tpu.concatenate %9, %4 in 1 : vector<1x32xf32>, vector<1x32xf32> -> vector<1x64xf32>
    %c40 = arith.constant 40 : index
    %c0_3 = arith.constant 0 : index
    %12 = vector.load %arg3[%c40, %c0_3] : memref<264x256xf32, #tpu.memory_space<vmem>>, vector<64x128xf32>
    %cst = arith.constant dense<0.000000e+00> : vector<1x128xf32>
    %13 = tpu.matmul %11, %12, %cst {dimension_numbers = #tpu.dot_dimension_numbers<[1], [0], [0], [1], [0, 0, 1, 1], [], []>} : vector<1x64xf32>, vector<64x128xf32>, vector<1x128xf32> -> vector<1x128xf32>
    %c0_4 = arith.constant 0 : index
    %c0_5 = arith.constant 0 : index
    %14 = vector.load %arg4[%c0_4, %c0_5] : memref<8x256xf32, #tpu.memory_space<vmem>>, vector<1x128xf32>
    %15 = arith.addf %13, %14 : vector<1x128xf32>
    %c10_i32 = arith.constant 10 : i32
    %16 = vector.broadcast %c10_i32 : i32 to vector<1x128xi32>
    %17 = arith.cmpi slt, %10, %16 : vector<1x128xi32>
    %cst_6 = arith.constant -1.000000e+30 : f32
    %18 = vector.broadcast %cst_6 : f32 to vector<1x128xf32>
    %19 = arith.select %17, %15, %18 : vector<1x128xi1>, vector<1x128xf32>
    %cst_7 = arith.constant dense<0xFF800000> : vector<1xf32>
    %20 = vector.multi_reduction <maximumf>, %19, %cst_7 [1] : vector<1x128xf32> to vector<1xf32>
    %21 = vector.shape_cast %20 : vector<1xf32> to vector<1x1xf32>
    %22 = vector.broadcast %21 : vector<1x1xf32> to vector<1x128xf32>
    %23 = arith.subf %19, %22 : vector<1x128xf32>
    %24 = math.exp %23 : vector<1x128xf32>
    %cst_8 = arith.constant dense<0.000000e+00> : vector<1xf32>
    %25 = vector.multi_reduction <add>, %24, %cst_8 [1] : vector<1x128xf32> to vector<1xf32>
    %26 = vector.shape_cast %25 : vector<1xf32> to vector<1x1xf32>
    %27 = tpu.reciprocal %26 : vector<1x1xf32> -> vector<1x1xf32>
    %28 = vector.broadcast %27 : vector<1x1xf32> to vector<1x128xf32>
    %29 = arith.mulf %24, %28 : vector<1x128xf32>
    %c0_9 = arith.constant 0 : index
    %c0_10 = arith.constant 0 : index
    %30 = vector.load %arg5[%c0_9, %c0_10] : memref<128x32xf32, #tpu.memory_space<vmem>>, vector<128x32xf32>
    %cst_11 = arith.constant dense<0.000000e+00> : vector<1x32xf32>
    %31 = tpu.matmul %29, %30, %cst_11 {dimension_numbers = #tpu.dot_dimension_numbers<[1], [0], [0], [1], [0, 0, 1, 1], [], []>} : vector<1x128xf32>, vector<128x32xf32>, vector<1x32xf32> -> vector<1x32xf32>
    %32 = tpu.concatenate %9, %31 in 1 : vector<1x32xf32>, vector<1x32xf32> -> vector<1x64xf32>
    %c104 = arith.constant 104 : index
    %c0_12 = arith.constant 0 : index
    %33 = vector.load %arg3[%c104, %c0_12] : memref<264x256xf32, #tpu.memory_space<vmem>>, vector<64x128xf32>
    %cst_13 = arith.constant dense<0.000000e+00> : vector<1x128xf32>
    %34 = tpu.matmul %32, %33, %cst_13 {dimension_numbers = #tpu.dot_dimension_numbers<[1], [0], [0], [1], [0, 0, 1, 1], [], []>} : vector<1x64xf32>, vector<64x128xf32>, vector<1x128xf32> -> vector<1x128xf32>
    %c1 = arith.constant 1 : index
    %c0_14 = arith.constant 0 : index
    %35 = vector.load %arg4[%c1, %c0_14] : memref<8x256xf32, #tpu.memory_space<vmem>>, vector<1x128xf32>
    %36 = arith.addf %34, %35 : vector<1x128xf32>
    %cst_15 = arith.constant 0.000000e+00 : f32
    %37 = vector.broadcast %cst_15 : f32 to vector<1x128xf32>
    %38 = arith.maximumf %36, %37 : vector<1x128xf32>
    %39 = vector.extract_strided_slice %38 {offsets = [0, 0], sizes = [1, 32], strides = [1, 1]} : vector<1x128xf32> to vector<1x32xf32>
    %40 = tpu.concatenate %39, %4 in 1 : vector<1x32xf32>, vector<1x32xf32> -> vector<1x64xf32>
    %c168 = arith.constant 168 : index
    %c0_16 = arith.constant 0 : index
    %41 = vector.load %arg3[%c168, %c0_16] : memref<264x256xf32, #tpu.memory_space<vmem>>, vector<64x256xf32>
    %cst_17 = arith.constant dense<0.000000e+00> : vector<1x256xf32>
    %42 = tpu.matmul %40, %41, %cst_17 {dimension_numbers = #tpu.dot_dimension_numbers<[1], [0], [0], [1], [0, 0, 1, 1], [], []>} : vector<1x64xf32>, vector<64x256xf32>, vector<1x256xf32> -> vector<1x256xf32>
    %c2 = arith.constant 2 : index
    %c0_18 = arith.constant 0 : index
    %43 = vector.load %arg4[%c2, %c0_18] : memref<8x256xf32, #tpu.memory_space<vmem>>, vector<1x256xf32>
    %44 = arith.addf %42, %43 : vector<1x256xf32>
    %45 = vector.extract_strided_slice %44 {offsets = [0, 0], sizes = [1, 32], strides = [1, 1]} : vector<1x256xf32> to vector<1x32xf32>
    %46 = vector.extract_strided_slice %44 {offsets = [0, 32], sizes = [1, 32], strides = [1, 1]} : vector<1x256xf32> to vector<1x32xf32>
    %47 = vector.extract_strided_slice %44 {offsets = [0, 64], sizes = [1, 32], strides = [1, 1]} : vector<1x256xf32> to vector<1x32xf32>
    %48 = vector.extract_strided_slice %44 {offsets = [0, 96], sizes = [1, 32], strides = [1, 1]} : vector<1x256xf32> to vector<1x32xf32>
    %49 = vector.extract_strided_slice %44 {offsets = [0, 128], sizes = [1, 32], strides = [1, 1]} : vector<1x256xf32> to vector<1x32xf32>
    %50 = vector.extract_strided_slice %44 {offsets = [0, 160], sizes = [1, 32], strides = [1, 1]} : vector<1x256xf32> to vector<1x32xf32>
    %51 = arith.addf %45, %48 : vector<1x32xf32>
    %52 = arith.negf %51 : vector<1x32xf32>
    %53 = math.exp %52 : vector<1x32xf32>
    %cst_19 = arith.constant 1.000000e+00 : f32
    %54 = vector.broadcast %cst_19 : f32 to vector<1x32xf32>
    %55 = arith.addf %54, %53 : vector<1x32xf32>
    %56 = arith.divf %54, %55 : vector<1x32xf32>
    %57 = arith.addf %46, %49 : vector<1x32xf32>
    %58 = arith.negf %57 : vector<1x32xf32>
    %59 = math.exp %58 : vector<1x32xf32>
    %cst_20 = arith.constant 1.000000e+00 : f32
    %60 = vector.broadcast %cst_20 : f32 to vector<1x32xf32>
    %61 = arith.addf %60, %59 : vector<1x32xf32>
    %62 = arith.divf %60, %61 : vector<1x32xf32>
    %63 = arith.mulf %56, %50 : vector<1x32xf32>
    %64 = arith.addf %47, %63 : vector<1x32xf32>
    %65 = math.tanh %64 : vector<1x32xf32>
    %cst_21 = arith.constant 1.000000e+00 : f32
    %66 = vector.broadcast %cst_21 : f32 to vector<1x32xf32>
    %67 = arith.subf %66, %62 : vector<1x32xf32>
    %68 = arith.mulf %67, %65 : vector<1x32xf32>
    %69 = arith.mulf %62, %4 : vector<1x32xf32>
    %70 = arith.addf %68, %69 : vector<1x32xf32>
    %cst_22 = arith.constant 0.000000e+00 : f32
    %71 = vector.broadcast %cst_22 : f32 to vector<1x96xf32>
    %72 = tpu.concatenate %70, %71 in 1 : vector<1x32xf32>, vector<1x96xf32> -> vector<1x128xf32>
    %c0_23 = arith.constant 0 : index
    %c0_24 = arith.constant 0 : index
    %73 = vector.load %arg7[%c0_23, %c0_24] : memref<1x128xf32, #tpu.memory_space<vmem>>, vector<1x128xf32>
    tpu.vector_store %arg7[%c0_23, %c0_24], %72 {strides = array<i32>} : memref<1x128xf32, #tpu.memory_space<vmem>>, vector<1x128xf32>,
    %c232 = arith.constant 232 : index
    %c0_25 = arith.constant 0 : index
    %74 = vector.load %arg3[%c232, %c0_25] : memref<264x256xf32, #tpu.memory_space<vmem>>, vector<32x128xf32>
    %cst_26 = arith.constant dense<0.000000e+00> : vector<1x128xf32>
    %75 = tpu.matmul %70, %74, %cst_26 {dimension_numbers = #tpu.dot_dimension_numbers<[1], [0], [0], [1], [0, 0, 1, 1], [], []>} : vector<1x32xf32>, vector<32x128xf32>, vector<1x128xf32> -> vector<1x128xf32>
    %c3 = arith.constant 3 : index
    %c0_27 = arith.constant 0 : index
    %76 = vector.load %arg4[%c3, %c0_27] : memref<8x256xf32, #tpu.memory_space<vmem>>, vector<1x128xf32>
    %77 = arith.addf %75, %76 : vector<1x128xf32>
    %c40_i32 = arith.constant 40 : i32
    %78 = vector.broadcast %c40_i32 : i32 to vector<1x128xi32>
    %79 = arith.cmpi slt, %10, %78 : vector<1x128xi32>
    %cst_28 = arith.constant -1.000000e+30 : f32
    %80 = vector.broadcast %cst_28 : f32 to vector<1x128xf32>
    %81 = arith.select %79, %77, %80 : vector<1x128xi1>, vector<1x128xf32>
    %cst_29 = arith.constant dense<0xFF800000> : vector<1xf32>
    %82 = vector.multi_reduction <maximumf>, %81, %cst_29 [1] : vector<1x128xf32> to vector<1xf32>
    %83 = vector.shape_cast %82 : vector<1xf32> to vector<1x1xf32>
    %84 = vector.broadcast %83 : vector<1x1xf32> to vector<1x128xf32>
    %85 = arith.subf %81, %84 : vector<1x128xf32>
    %86 = math.exp %85 : vector<1x128xf32>
    %cst_30 = arith.constant dense<0.000000e+00> : vector<1xf32>
    %87 = vector.multi_reduction <add>, %86, %cst_30 [1] : vector<1x128xf32> to vector<1xf32>
    %88 = vector.shape_cast %87 : vector<1xf32> to vector<1x1xf32>
    %89 = math.log %88 : vector<1x1xf32>
    %90 = vector.broadcast %89 : vector<1x1xf32> to vector<1x128xf32>
    %91 = arith.subf %85, %90 : vector<1x128xf32>
    %92 = tpu.concatenate %91, %72, %29 in 0 : vector<1x128xf32>, vector<1x128xf32>, vector<1x128xf32> -> vector<3x128xf32>
    %93 = vector.shape_cast %92 : vector<3x128xf32> to vector<1x3x128xf32>
    %c0_31 = arith.constant 0 : index
    %c0_32 = arith.constant 0 : index
    %c0_33 = arith.constant 0 : index
    %94 = vector.load %arg6[%c0_31, %c0_32, %c0_33] : memref<1x3x128xf32, #tpu.memory_space<vmem>>, vector<1x3x128xf32>
    tpu.vector_store %arg6[%c0_31, %c0_32, %c0_33], %93 {strides = array<i32>} : memref<1x3x128xf32, #tpu.memory_space<vmem>>, vector<1x3x128xf32>,
    return
  }
  func.func @transform_0(%arg0: i32) -> i32 {
    %c0_i32 = arith.constant 0 : i32
    %c0_i32_0 = arith.constant 0 : i32
    return %c0_i32 : i32
  }
  func.func @transform_1(%arg0: i32) -> (i32, i32) {
    %c0_i32 = arith.constant 0 : i32
    %c0_i32_0 = arith.constant 0 : i32
    %c0_i32_1 = arith.constant 0 : i32
    return %c0_i32, %c0_i32_0 : i32, i32
  }
  func.func @transform_2(%arg0: i32) -> (i32, i32) {
    %c0_i32 = arith.constant 0 : i32
    %c0_i32_0 = arith.constant 0 : i32
    %c0_i32_1 = arith.constant 0 : i32
    return %c0_i32, %c0_i32_0 : i32, i32
  }
  func.func @transform_3(%arg0: i32) -> (i32, i32) {
    %c0_i32 = arith.constant 0 : i32
    %c0_i32_0 = arith.constant 0 : i32
    %c0_i32_1 = arith.constant 0 : i32
    return %c0_i32, %c0_i32_0 : i32, i32
  }
  func.func @transform_4(%arg0: i32) -> (i32, i32) {
    %c0_i32 = arith.constant 0 : i32
    %c0_i32_0 = arith.constant 0 : i32
    %c0_i32_1 = arith.constant 0 : i32
    return %c0_i32, %c0_i32_0 : i32, i32
  }
  func.func @transform_5(%arg0: i32) -> (i32, i32, i32) {
    %c0_i32 = arith.constant 0 : i32
    %c0_i32_0 = arith.constant 0 : i32
    %c0_i32_1 = arith.constant 0 : i32
    return %arg0, %c0_i32, %c0_i32_0 : i32, i32, i32
  }
}

</mosaic_0001>

<llo_original>
// kernel: attn_decoder_forward_seq.1
$region0: #{attn_decoder_forward_seq.1}
  #allocation0 [shape = 'u32[]', space=smem, size = 0x4, offset = 0x4, fixed_abs, tag = 'smem constant byte address 0x4 - core index']
  #allocation1 [shape = 'u32[144,128]{1,0:T(1,128)}', space=vmem, size = 0x12000, scoped, tag = 'internal scratch']
  #allocation2 [shape = 'f32[1,128]{1,0:T(1,128)}', space=vmem, size = 0x200, scoped, tag = 'scratch operand']
  %s0 = inlined_call_operand.vmem [shape: s32[6], index: 0, kind: input, shape index: {}]
  %s1 = inlined_call_operand.vmem [shape: f32[1,128], index: 1, kind: input, shape index: {}]
  %s2 = inlined_call_operand.hbm [shape: f32[264,256], index: 2, kind: input, shape index: {}]
  %s3 = inlined_call_operand.vmem [shape: f32[8,256], index: 3, kind: input, shape index: {}]
  %s4 = inlined_call_operand.vmem [shape: f32[128,32], index: 4, kind: input, shape index: {}]
  %s5 = inlined_call_operand.vmem [shape: f32[6,3,128], index: 5, kind: output, shape index: {}]
  %s6 = sld [smem:[#allocation0]]
  $region65: #{attn_decoder_forward_seq.1} parent=0
    _
  %s8 = ssub.s32 1, %s6
  %s9 = scalar_select 0, %s8, %s6
  $region1: #{attn_decoder_forward_seq.1} parent=0
    #allocation3 [shape = 'u8[512]{0}', space=smem, size = 0x200, scoped, tag = 'input window, operand 0, single buffered']
    #allocation4 [shape = 's32[2]{0}', space=sflag, size = 0x8, scoped, tag = 'scoped memory for attn_decoder_forward_seq.1']
    #allocation5 [shape = 's32[2]{0}', space=sflag, size = 0x8, scoped, tag = 'scoped memory for attn_decoder_forward_seq.1']
    #allocation6 [shape = 'u8[270336]{0}', space=vmem, size = 0x42000, scoped, tag = 'input window, operand 2, single buffered']
    %10 = vsyncpa [#allocation5], 0
    %11 = vsyncpa [#allocation4], 0
    loop: start=0, step=1, limit=8
    $region2: #{attn_decoder_forward_seq.1} parent=1 // loop_pre_header
      _
    $region3: #{attn_decoder_forward_seq.1} parent=1 // loop_header
      %s13 = sphi 0, %s17
      %p14 = scmp.ge.s32.totalorder %s13, 8
      %s21 = sphi 0, %s21
      %s23 = sphi 0, %s21
      %s24 = sphi 0, %s23
      %s38 = sphi 0, %s24
      %s42 = sphi 0, %s42
      %s44 = sphi 0, %s42
      %s45 = sphi 0, %s44
      %s59 = sphi 0, %s45
      %s63 = sphi 0, %s63
      %s65 = sphi 0, %s63
      %s66 = sphi 0, %s65
      %s80 = sphi 0, %s66
      %s84 = sphi 0, %s84
      %s86 = sphi 0, %s84
      %s87 = sphi 0, %s86
      %s101 = sphi 0, %s87
      %s105 = sphi 0, %s105
      %s107 = sphi 0, %s105
      %s108 = sphi 0, %s107
      %s122 = sphi 0, %s108
      %s128 = sphi 0, %s130
      %s131 = sphi 0, %s128
      %s132 = sphi 0, %s131
      %s148 = sphi 0, %s132
    $region4: #{attn_decoder_forward_seq.1} parent=1 // loop_header_branch
      %16 = sbr.rel (%p14) target = $region8
    $region5: #{attn_decoder_forward_seq.1} parent=1 // loop_body
      %s18 = ssub.s32 %s13, 1
      %s19 = ssub.s32 %s13, 2
      %s20 = sadd.s32 %s13, 1
      %s22 = sadd.s32 %s21, 1
      %p25 = scmp.eq.s32.totalorder %s13, 5
      %p26 = scmp.ne.s32.totalorder %s21, %s23
      %p27 = scmp.eq.s32.totalorder %s13, 0
      %p28 = por %p26, %p27
      %p29 = scmp.ne.s32.totalorder %s21, %s23
      %p30 = scmp.eq.s32.totalorder %s18, 5
      %p31 = por %p29, %p30
      %p32 = scmp.ne.s32.totalorder %s23, %s24
      %p33 = scmp.eq.s32.totalorder %s18, 0
      %p34 = por %p32, %p33
      %p35 = scmp.ne.s32.totalorder %s23, %s24
      %p36 = scmp.eq.s32.totalorder %s19, 5
      %p37 = por %p35, %p36
      %p39 = scmp.ne.s32.totalorder %s24, %s38
      %p40 = scmp.eq.s32.totalorder %s19, 0
      %p41 = por %p39, %p40
      %s43 = sadd.s32 %s42, 1
      %p46 = scmp.eq.s32.totalorder %s13, 5
      %p47 = scmp.ne.s32.totalorder %s42, %s44
      %p48 = scmp.eq.s32.totalorder %s13, 0
      %p49 = por %p47, %p48
      %p50 = scmp.ne.s32.totalorder %s42, %s44
      %p51 = scmp.eq.s32.totalorder %s18, 5
      %p52 = por %p50, %p51
      %p53 = scmp.ne.s32.totalorder %s44, %s45
      %p54 = scmp.eq.s32.totalorder %s18, 0
      %p55 = por %p53, %p54
      %p56 = scmp.ne.s32.totalorder %s44, %s45
      %p57 = scmp.eq.s32.totalorder %s19, 5
      %p58 = por %p56, %p57
      %p60 = scmp.ne.s32.totalorder %s45, %s59
      %p61 = scmp.eq.s32.totalorder %s19, 0
      %p62 = por %p60, %p61
      %s64 = sadd.s32 %s63, 1
      %p67 = scmp.eq.s32.totalorder %s13, 5
      %p68 = scmp.ne.s32.totalorder %s63, %s65
      %p69 = scmp.eq.s32.totalorder %s13, 0
      %p70 = por %p68, %p69
      %p71 = scmp.ne.s32.totalorder %s63, %s65
      %p72 = scmp.eq.s32.totalorder %s18, 5
      %p73 = por %p71, %p72
      %p74 = scmp.ne.s32.totalorder %s65, %s66
      %p75 = scmp.eq.s32.totalorder %s18, 0
      %p76 = por %p74, %p75
      %p77 = scmp.ne.s32.totalorder %s65, %s66
      %p78 = scmp.eq.s32.totalorder %s19, 5
      %p79 = por %p77, %p78
      %p81 = scmp.ne.s32.totalorder %s66, %s80
      %p82 = scmp.eq.s32.totalorder %s19, 0
      %p83 = por %p81, %p82
      %s85 = sadd.s32 %s84, 1
      %p88 = scmp.eq.s32.totalorder %s13, 5
      %p89 = scmp.ne.s32.totalorder %s84, %s86
      %p90 = scmp.eq.s32.totalorder %s13, 0
      %p91 = por %p89, %p90
      %p92 = scmp.ne.s32.totalorder %s84, %s86
      %p93 = scmp.eq.s32.totalorder %s18, 5
      %p94 = por %p92, %p93
      %p95 = scmp.ne.s32.totalorder %s86, %s87
      %p96 = scmp.eq.s32.totalorder %s18, 0
      %p97 = por %p95, %p96
      %p98 = scmp.ne.s32.totalorder %s86, %s87
      %p99 = scmp.eq.s32.totalorder %s19, 5
      %p100 = por %p98, %p99
      %p102 = scmp.ne.s32.totalorder %s87, %s101
      %p103 = scmp.eq.s32.totalorder %s19, 0
      %p104 = por %p102, %p103
      %s106 = sadd.s32 %s105, 1
      %p109 = scmp.eq.s32.totalorder %s13, 5
      %p110 = scmp.ne.s32.totalorder %s105, %s107
      %p111 = scmp.eq.s32.totalorder %s13, 0
      %p112 = por %p110, %p111
      %p113 = scmp.ne.s32.totalorder %s105, %s107
      %p114 = scmp.eq.s32.totalorder %s18, 5
      %p115 = por %p113, %p114
      %p116 = scmp.ne.s32.totalorder %s107, %s108
      %p117 = scmp.eq.s32.totalorder %s18, 0
      %p118 = por %p116, %p117
      %p119 = scmp.ne.s32.totalorder %s107, %s108
      %p120 = scmp.eq.s32.totalorder %s19, 5
      %p121 = por %p119, %p120
      %p123 = scmp.ne.s32.totalorder %s108, %s122
      %p124 = scmp.eq.s32.totalorder %s19, 0
      %p125 = por %p123, %p124
      %s126 = ssub.s32 %s13, %s20
      %p127 = scmp.eq.s32.totalorder %s126, 0
      %s129 = sadd.s32 %s128, 1
      %s130 = scalar_select %p127, %s128, %s129
      %p133 = pneg %p127
      %p134 = scmp.eq.s32.totalorder %s13, 5
      %p135 = por %p133, %p134
      %p136 = scmp.ne.s32.totalorder %s128, %s131
      %p137 = scmp.eq.s32.totalorder %s13, 0
      %p138 = por %p136, %p137
      %p139 = scmp.ne.s32.totalorder %s128, %s131
      %p140 = scmp.eq.s32.totalorder %s18, 5
      %p141 = por %p139, %p140
      %p142 = scmp.ne.s32.totalorder %s131, %s132
      %p143 = scmp.eq.s32.totalorder %s18, 0
      %p144 = por %p142, %p143
      %p145 = scmp.ne.s32.totalorder %s131, %s132
      %p146 = scmp.eq.s32.totalorder %s19, 5
      %p147 = por %p145, %p146
      %p149 = scmp.ne.s32.totalorder %s132, %s148
      %p150 = scmp.eq.s32.totalorder %s19, 0
      %p151 = por %p149, %p150
      %p152 = scmp.le.s32.totalorder 1, %s13
      %p153 = scmp.lt.s32.totalorder %s13, 7
      %p154 = pnand %p152, %p153
      %p155 = pneg %p154
      // Predicated region
      $region9: #{attn_decoder_forward_seq.1} parent=5 // pred_check
        _
      $region10: #{attn_decoder_forward_seq.1} parent=5 // pred_check_branch
        %157 = sbr.rel (%p154) target = $region12
      $region11: #{attn_decoder_forward_seq.1} parent=5 // pred_region
        %s158 = ssub.s32 %s13, 1
        // Predicated region
        $region13: #{attn_decoder_forward_seq.1} parent=11 // pred_check
          %p159 = pneg %p34
        $region14: #{attn_decoder_forward_seq.1} parent=11 // pred_check_branch
          %161 = sbr.rel (%p159) target = $region16
        $region15: #{attn_decoder_forward_seq.1} parent=11 // pred_region
          %s163 = ssub.s32 16, 16
          %164 = vsyncadd [#allocation5], %s163
          %s166 = sshll.u32 %s0, 4
          %s167 = int_to_ptr.vmem [resolvable:$true] %s166
          %169 = dma.vmem_to_smem %s167, 16, [#allocation3], [#allocation5]
        $region16: #{attn_decoder_forward_seq.1} parent=11 // pred_fallthru
          _
        // Predicated region
        $region17: #{attn_decoder_forward_seq.1} parent=11 // pred_check
          %p170 = pneg %p55
        $region18: #{attn_decoder_forward_seq.1} parent=11 // pred_check_branch
          %172 = sbr.rel (%p170) target = $region20
        $region19: #{attn_decoder_forward_seq.1} parent=11 // pred_region
          _
        $region20: #{attn_decoder_forward_seq.1} parent=11 // pred_fallthru
          _
        // Predicated region
        $region21: #{attn_decoder_forward_seq.1} parent=11 // pred_check
          %p173 = pneg %p76
        $region22: #{attn_decoder_forward_seq.1} parent=11 // pred_check_branch
          %175 = sbr.rel (%p173) target = $region24
        $region23: #{attn_decoder_forward_seq.1} parent=11 // pred_region
          %s177 = ssub.s32 8448, 8448
          %178 = vsyncadd [#allocation4], %s177
          %s179 = sshll.u32 [#allocation6], 4
          %s180 = int_to_ptr.vmem [resolvable:$true] %s179
          %185 = dma.hbm_to_vmem [thread:$0]  %s2, 8448, %s180, [#allocation4], 256, 256, 16
        $region24: #{attn_decoder_forward_seq.1} parent=11 // pred_fallthru
          _
        // Predicated region
        $region25: #{attn_decoder_forward_seq.1} parent=11 // pred_check
          %p186 = pneg %p97
        $region26: #{attn_decoder_forward_seq.1} parent=11 // pred_check_branch
          %188 = sbr.rel (%p186) target = $region28
        $region27: #{attn_decoder_forward_seq.1} parent=11 // pred_region
          _
        $region28: #{attn_decoder_forward_seq.1} parent=11 // pred_fallthru
          _
        // Predicated region
        $region29: #{attn_decoder_forward_seq.1} parent=11 // pred_check
          %p189 = pneg %p118
        $region30: #{attn_decoder_forward_seq.1} parent=11 // pred_check_branch
          %191 = sbr.rel (%p189) target = $region32
        $region31: #{attn_decoder_forward_seq.1} parent=11 // pred_region
          _
        $region32: #{attn_decoder_forward_seq.1} parent=11 // pred_fallthru
          _
      $region12: #{attn_decoder_forward_seq.1} parent=5 // pred_fallthru
        _
      %p192 = scmp.lt.s32.totalorder %s13, 6
      // Predicated region
      $region33: #{attn_decoder_forward_seq.1} parent=5 // pred_check
        %p193 = pneg %p192
      $region34: #{attn_decoder_forward_seq.1} parent=5 // pred_check_branch
        %195 = sbr.rel (%p193) target = $region36
      $region35: #{attn_decoder_forward_seq.1} parent=5 // pred_region
        _
      $region36: #{attn_decoder_forward_seq.1} parent=5 // pred_fallthru
        _
      %p196 = scmp.le.s32.totalorder 1, %s13
      %p197 = scmp.lt.s32.totalorder %s13, 7
      %p198 = pnand %p196, %p197
      %p199 = pneg %p198
      // Predicated region
      $region37: #{attn_decoder_forward_seq.1} parent=5 // pred_check
        _
      $region38: #{attn_decoder_forward_seq.1} parent=5 // pred_check_branch
        %201 = sbr.rel (%p198) target = $region40
      $region39: #{attn_decoder_forward_seq.1} parent=5 // pred_region
        %s202 = ssub.s32 %s13, 1
        // Predicated region
        $region41: #{attn_decoder_forward_seq.1} parent=39 // pred_check
          %p203 = pneg %p34
        $region42: #{attn_decoder_forward_seq.1} parent=39 // pred_check_branch
          %205 = sbr.rel (%p203) target = $region44
        $region43: #{attn_decoder_forward_seq.1} parent=39 // pred_region
          %206 = dma.done [#allocation5], 16
        $region44: #{attn_decoder_forward_seq.1} parent=39 // pred_fallthru
          _
        // Predicated region
        $region45: #{attn_decoder_forward_seq.1} parent=39 // pred_check
          %p207 = pneg %p76
        $region46: #{attn_decoder_forward_seq.1} parent=39 // pred_check_branch
          %209 = sbr.rel (%p207) target = $region48
        $region47: #{attn_decoder_forward_seq.1} parent=39 // pred_region
          %210 = dma.done [#allocation4], 8448
        $region48: #{attn_decoder_forward_seq.1} parent=39 // pred_fallthru
          _
        %211 = sfence
        %p212 = pneg %p34
        %p213 = pneg %p31
        %p214 = pneg %p55
        %p215 = pneg %p52
        %p216 = pneg %p76
        %p217 = pneg %p73
        %p218 = pneg %p97
        %p219 = pneg %p94
        %p220 = pneg %p118
        %p221 = pneg %p115
        %p222 = pneg %p144
        %p223 = pneg %p141
        %p224 = scmp.lt.s32.totalorder %s18, 5
        %s225 = scalar_select %p224, %s18, 5
        %s226 = smul.addr %s225, 4
        %s227 = scalar_lea.vmem %s5, %s226
        %p228 = scmp.lt.s32.totalorder %s18, 5
        %s229 = scalar_select %p228, %s18, 5
        %s230 = smul.addr %s229, 4
        %s231 = scalar_lea.vmem %s5, %s230
        %p232 = scmp.eq.s32.totalorder %s18, 0
        // Predicated region
        $region49: #{attn_decoder_forward_seq.1} parent=39 // pred_check
          %p233 = pneg %p232
        $region50: #{attn_decoder_forward_seq.1} parent=39 // pred_check_branch
          %235 = sbr.rel (%p233) target = $region52
        $region51: #{attn_decoder_forward_seq.1} parent=39 // pred_region
          %v236 = vld [vmem:[%s1] sm:$0x1]
          %237 = vst [vmem:[#allocation2] sm:$0x1] %v236
        $region52: #{attn_decoder_forward_seq.1} parent=39 // pred_fallthru
          _
        %v238 = vld [vmem:[#allocation2] sm:$0x1]
        %s239 = sld [smem:[#allocation3 + %s18]]
        %s240 = sshra.s32 %s239, 3
        %s241 = sand.u32 %s239, 7
        %s242 = sshra.s32 %s239, 3
        %s243 = sand.u32 %s239, 7
        %s244 = smul.u32 %s240, 2
        %s245 = smul.u32 %s244, 8
        %s246 = sadd.s32 %s245, %s243
        %s247 = scalar_lea.vmem [#allocation6], %s246
        %v248 = vld [vmem:[%s247] ss:$8 sm:$0x3]
        %v249 = vlaneseq
        %v250 = vand.u32 %v249, 127
        %v252 = vlaneseq
        %v253 = vshrl.u32 %v252, 7
        %v254 = vsub.s32 0, %v253
        %v255 = vrot.slane %v238, %v254
        %256 = vrot.lane.b32.xlu0 %v255, 32
        %v257 = vpop.permute.xlu0 %256
        %vm259 = vcmask 261120
        %v260 = vsel %vm259, %v248, %v257
        %v261 = vld [vmem:[#allocation6 + $0x50] sm:$0xff]
        %v262 = vld [vmem:[#allocation6 + $0x60] sm:$0xff]
        %v263 = vld [vmem:[#allocation6 + $0x70] sm:$0xff]
        %v264 = vld [vmem:[#allocation6 + $0x80] sm:$0xff]
        %v265 = vld [vmem:[#allocation6 + $0x90] sm:$0xff]
        %v266 = vld [vmem:[#allocation6 + $0xa0] sm:$0xff]
        %v267 = vld [vmem:[#allocation6 + $0xb0] sm:$0xff]
        %v268 = vld [vmem:[#allocation6 + $0xc0] sm:$0xff]
        %v269 = vld [vmem:[%s3] ss:$0 sm:$0xff]
        %vm270 = vcmask 523264
        %v272 = vsel %vm270, %v260, 0
        %274 = vmatprep.subr.mxu0 0.0
        %275 = vmatpush1.msra.mxu0 %v261
        %276 = vmatprep.subr.mxu0 0.0
        %277 = vmatpush1.msra.mxu0 %v262
        %278 = vmatprep.subr.mxu0 0.0
        %279 = vmatpush1.msra.mxu0 %v263
        %280 = vmatprep.subr.mxu0 0.0
        %281 = vmatpush1.msra.mxu0 %v264
        %282 = vmatprep.subr.mxu0 0.0
        %283 = vmatpush1.msra.mxu0 %v265
        %284 = vmatprep.subr.mxu0 0.0
        %285 = vmatpush1.msra.mxu0 %v266
        %286 = vmatprep.subr.mxu0 0.0
        %287 = vmatpush1.msra.mxu0 %v267
        %288 = vmatprep.subr.mxu0 0.0
        %289 = vmatpush1.msra.mxu0 %v268
        %290 = vmatprep.subr.mxu0 0.0
        %291 = vmatpush1.msra.mxu0 0.0
        %292 = vmatprep.subr.mxu0 0.0
        %293 = vmatpush1.msra.mxu0 0.0
        %294 = vmatprep.subr.mxu0 0.0
        %295 = vmatpush1.msra.mxu0 0.0
        %296 = vmatprep.subr.mxu0 0.0
        %297 = vmatpush1.msra.mxu0 0.0
        %298 = vmatprep.subr.mxu0 0.0
        %299 = vmatpush1.msra.mxu0 0.0
        %300 = vmatprep.subr.mxu0 0.0
        %301 = vmatpush1.msra.mxu0 0.0
        %302 = vmatprep.subr.mxu0 0.0
        %303 = vmatpush1.msra.mxu0 0.0
        %304 = vmatprep.subr.mxu0 0.0
        %305 = vmatpush1.msra.mxu0 0.0
        %306 = vmatprep.subr.mxu0 0.0
        %307 = vmatpush1.msra.mxu0 0.0
        %308 = vmatprep.subr.mxu0 0.0
        %309 = vmatpush1.msra.mxu0 0.0
        %310 = vmatprep.subr.mxu0 0.0
        %311 = vmatpush1.msra.mxu0 0.0
        %312 = vmatprep.subr.mxu0 0.0
        %313 = vmatpush1.msra.mxu0 0.0
        %314 = vmatprep.subr.mxu0 0.0
        %315 = vmatpush1.msra.mxu0 0.0
        %316 = vmatprep.subr.mxu0 0.0
        %317 = vmatpush1.msra.mxu0 0.0
        %318 = vmatprep.subr.mxu0 0.0
        %319 = vmatpush1.msra.mxu0 0.0
        %320 = vmatprep.subr.mxu0 0.0
        %321 = vmatpush1.msra.mxu0 0.0
        %322 = vmatprep.subr.mxu0 0.0
        %323 = vmatpush1.msra.mxu0 0.0
        %324 = vmatprep.subr.mxu0 0.0
        %325 = vmatpush1.msra.mxu0 0.0
        %326 = vmatprep.subr.mxu0 0.0
        %327 = vmatpush1.msra.mxu0 0.0
        %328 = vmatprep.subr.mxu0 0.0
        %329 = vmatpush1.msra.mxu0 0.0
        %330 = vmatprep.subr.mxu0 0.0
        %331 = vmatpush1.msra.mxu0 0.0
        %332 = vmatprep.subr.mxu0 0.0
        %333 = vmatpush1.msra.mxu0 0.0
        %334 = vmatprep.subr.mxu0 0.0
        %335 = vmatpush1.msra.mxu0 0.0
        %336 = vmatprep.subr.mxu0 0.0
        %337 = vmatpush1.msra.mxu0 0.0
        %338 = vmatprep.mubr.f32.mxu0 0.0
        %339 = vmatmul.mubr.f32.gmra.mrb[0].mxu0 %v272
        %v340 = vpop.f32.mrb[0].mxu0
        %v341 = vadd.f32 %v269, %v340
        %v342 = vpop.f32.mrb[0].mxu0
        %343 = vdwg.mxu0
        %vm344 = vcmp.lt.s32.totalorder %v250, 10
        %v345 = vsel %vm344, %v341, -1e+30
        %vm346 = vcmask 1040384
        %v347 = vsel %vm346, %v345, -inf
        %348 = vmax.xlane.f32.xlu0 %v347
        %v349 = vpop.xlane.xlu0 %348
        %v350 = vsub.f32 %v345, %v349
        %v351 = vmul.f32 %v350, 1.442695
        %v352 = vpow.pop %v351
        %v353 = vsel %vm346, %v352, 0.0
        %354 = vadd.xlane.f32.xlu0 %v353
        %v355 = vpop.xlane.xlu0 %354
        %v356 = vrcp.pop %v355
        %v357 = vmul.f32 %v352, %v356
        %v358 = vld [vmem:[%s4] sm:$0xff]
        %v359 = vld [vmem:[%s4 + $0x8] sm:$0xff]
        %v360 = vld [vmem:[%s4 + $0x10] sm:$0xff]
        %v361 = vld [vmem:[%s4 + $0x18] sm:$0xff]
        %v362 = vld [vmem:[%s4 + $0x20] sm:$0xff]
        %v363 = vld [vmem:[%s4 + $0x28] sm:$0xff]
        %v364 = vld [vmem:[%s4 + $0x30] sm:$0xff]
        %v365 = vld [vmem:[%s4 + $0x38] sm:$0xff]
        %v366 = vld [vmem:[%s4 + $0x40] sm:$0xff]
        %v367 = vld [vmem:[%s4 + $0x48] sm:$0xff]
        %v368 = vld [vmem:[%s4 + $0x50] sm:$0xff]
        %v369 = vld [vmem:[%s4 + $0x58] sm:$0xff]
        %v370 = vld [vmem:[%s4 + $0x60] sm:$0xff]
        %v371 = vld [vmem:[%s4 + $0x68] sm:$0xff]
        %v372 = vld [vmem:[%s4 + $0x70] sm:$0xff]
        %v373 = vld [vmem:[%s4 + $0x78] sm:$0xff]
        %374 = vmatprep.subr.mxu0 0.0
        %375 = vmatpush1.msra.mxu0 %v358
        %376 = vmatprep.subr.mxu0 0.0
        %377 = vmatpush1.msra.mxu0 %v359
        %378 = vmatprep.subr.mxu0 0.0
        %379 = vmatpush1.msra.mxu0 %v360
        %380 = vmatprep.subr.mxu0 0.0
        %381 = vmatpush1.msra.mxu0 %v361
        %382 = vmatprep.subr.mxu0 0.0
        %383 = vmatpush1.msra.mxu0 %v362
        %384 = vmatprep.subr.mxu0 0.0
        %385 = vmatpush1.msra.mxu0 %v363
        %386 = vmatprep.subr.mxu0 0.0
        %387 = vmatpush1.msra.mxu0 %v364
        %388 = vmatprep.subr.mxu0 0.0
        %389 = vmatpush1.msra.mxu0 %v365
        %390 = vmatprep.subr.mxu0 0.0
        %391 = vmatpush1.msra.mxu0 %v366
        %392 = vmatprep.subr.mxu0 0.0
        %393 = vmatpush1.msra.mxu0 %v367
        %394 = vmatprep.subr.mxu0 0.0
        %395 = vmatpush1.msra.mxu0 %v368
        %396 = vmatprep.subr.mxu0 0.0
        %397 = vmatpush1.msra.mxu0 %v369
        %398 = vmatprep.subr.mxu0 0.0
        %399 = vmatpush1.msra.mxu0 %v370
        %400 = vmatprep.subr.mxu0 0.0
        %401 = vmatpush1.msra.mxu0 %v371
        %402 = vmatprep.subr.mxu0 0.0
        %403 = vmatpush1.msra.mxu0 %v372
        %404 = vmatprep.subr.mxu0 0.0
        %405 = vmatpush1.msra.mxu0 %v373
        %406 = vmatprep.subr.mxu0 0.0
        %407 = vmatpush1.msra.mxu0 0.0
        %408 = vmatprep.subr.mxu0 0.0
        %409 = vmatpush1.msra.mxu0 0.0
        %410 = vmatprep.subr.mxu0 0.0
        %411 = vmatpush1.msra.mxu0 0.0
        %412 = vmatprep.subr.mxu0 0.0
        %413 = vmatpush1.msra.mxu0 0.0
        %414 = vmatprep.subr.mxu0 0.0
        %415 = vmatpush1.msra.mxu0 0.0
        %416 = vmatprep.subr.mxu0 0.0
        %417 = vmatpush1.msra.mxu0 0.0
        %418 = vmatprep.subr.mxu0 0.0
        %419 = vmatpush1.msra.mxu0 0.0
        %420 = vmatprep.subr.mxu0 0.0
        %421 = vmatpush1.msra.mxu0 0.0
        %422 = vmatprep.subr.mxu0 0.0
        %423 = vmatpush1.msra.mxu0 0.0
        %424 = vmatprep.subr.mxu0 0.0
        %425 = vmatpush1.msra.mxu0 0.0
        %426 = vmatprep.subr.mxu0 0.0
        %427 = vmatpush1.msra.mxu0 0.0
        %428 = vmatprep.subr.mxu0 0.0
        %429 = vmatpush1.msra.mxu0 0.0
        %430 = vmatprep.subr.mxu0 0.0
        %431 = vmatpush1.msra.mxu0 0.0
        %432 = vmatprep.subr.mxu0 0.0
        %433 = vmatpush1.msra.mxu0 0.0
        %434 = vmatprep.subr.mxu0 0.0
        %435 = vmatpush1.msra.mxu0 0.0
        %436 = vmatprep.subr.mxu0 0.0
        %437 = vmatpush1.msra.mxu0 0.0
        %438 = vmatprep.mubr.f32.mxu0 0.0
        %439 = vmatmul.mubr.f32.gmra.mrb[0].mxu0 %v357
        %v440 = vpop.f32.mrb[0].mxu0
        %v441 = vadd.f32 0.0, %v440
        %v442 = vpop.f32.mrb[0].mxu0
        %443 = vdwg.mxu0
        %445 = vrot.lane.b32.xlu0 %v441, 32
        %v446 = vpop.permute.xlu0 %445
        %v448 = vsel %vm259, %v248, %v446
        %v449 = vld [vmem:[#allocation6 + $0xd0] sm:$0xff]
        %v450 = vld [vmem:[#allocation6 + $0xe0] sm:$0xff]
        %v451 = vld [vmem:[#allocation6 + $0xf0] sm:$0xff]
        %v452 = vld [vmem:[#allocation6 + $0x100] sm:$0xff]
        %v453 = vld [vmem:[#allocation6 + $0x110] sm:$0xff]
        %v454 = vld [vmem:[#allocation6 + $0x120] sm:$0xff]
        %v455 = vld [vmem:[#allocation6 + $0x130] sm:$0xff]
        %v456 = vld [vmem:[#allocation6 + $0x140] sm:$0xff]
        %v457 = vld [vmem:[%s3 + $0x1] ss:$0 sm:$0xff]
        %v459 = vsel %vm270, %v448, 0
        %461 = vmatprep.subr.mxu0 0.0
        %462 = vmatpush1.msra.mxu0 %v449
        %463 = vmatprep.subr.mxu0 0.0
        %464 = vmatpush1.msra.mxu0 %v450
        %465 = vmatprep.subr.mxu0 0.0
        %466 = vmatpush1.msra.mxu0 %v451
        %467 = vmatprep.subr.mxu0 0.0
        %468 = vmatpush1.msra.mxu0 %v452
        %469 = vmatprep.subr.mxu0 0.0
        %470 = vmatpush1.msra.mxu0 %v453
        %471 = vmatprep.subr.mxu0 0.0
        %472 = vmatpush1.msra.mxu0 %v454
        %473 = vmatprep.subr.mxu0 0.0
        %474 = vmatpush1.msra.mxu0 %v455
        %475 = vmatprep.subr.mxu0 0.0
        %476 = vmatpush1.msra.mxu0 %v456
        %477 = vmatprep.subr.mxu0 0.0
        %478 = vmatpush1.msra.mxu0 0.0
        %479 = vmatprep.subr.mxu0 0.0
        %480 = vmatpush1.msra.mxu0 0.0
        %481 = vmatprep.subr.mxu0 0.0
        %482 = vmatpush1.msra.mxu0 0.0
        %483 = vmatprep.subr.mxu0 0.0
        %484 = vmatpush1.msra.mxu0 0.0
        %485 = vmatprep.subr.mxu0 0.0
        %486 = vmatpush1.msra.mxu0 0.0
        %487 = vmatprep.subr.mxu0 0.0
        %488 = vmatpush1.msra.mxu0 0.0
        %489 = vmatprep.subr.mxu0 0.0
        %490 = vmatpush1.msra.mxu0 0.0
        %491 = vmatprep.subr.mxu0 0.0
        %492 = vmatpush1.msra.mxu0 0.0
        %493 = vmatprep.subr.mxu0 0.0
        %494 = vmatpush1.msra.mxu0 0.0
        %495 = vmatprep.subr.mxu0 0.0
        %496 = vmatpush1.msra.mxu0 0.0
        %497 = vmatprep.subr.mxu0 0.0
        %498 = vmatpush1.msra.mxu0 0.0
        %499 = vmatprep.subr.mxu0 0.0
        %500 = vmatpush1.msra.mxu0 0.0
        %501 = vmatprep.subr.mxu0 0.0
        %502 = vmatpush1.msra.mxu0 0.0
        %503 = vmatprep.subr.mxu0 0.0
        %504 = vmatpush1.msra.mxu0 0.0
        %505 = vmatprep.subr.mxu0 0.0
        %506 = vmatpush1.msra.mxu0 0.0
        %507 = vmatprep.subr.mxu0 0.0
        %508 = vmatpush1.msra.mxu0 0.0
        %509 = vmatprep.subr.mxu0 0.0
        %510 = vmatpush1.msra.mxu0 0.0
        %511 = vmatprep.subr.mxu0 0.0
        %512 = vmatpush1.msra.mxu0 0.0
        %513 = vmatprep.subr.mxu0 0.0
        %514 = vmatpush1.msra.mxu0 0.0
        %515 = vmatprep.subr.mxu0 0.0
        %516 = vmatpush1.msra.mxu0 0.0
        %517 = vmatprep.subr.mxu0 0.0
        %518 = vmatpush1.msra.mxu0 0.0
        %519 = vmatprep.subr.mxu0 0.0
        %520 = vmatpush1.msra.mxu0 0.0
        %521 = vmatprep.subr.mxu0 0.0
        %522 = vmatpush1.msra.mxu0 0.0
        %523 = vmatprep.subr.mxu0 0.0
        %524 = vmatpush1.msra.mxu0 0.0
        %525 = vmatprep.mubr.f32.mxu0 0.0
        %526 = vmatmul.mubr.f32.gmra.mrb[0].mxu0 %v459
        %v527 = vpop.f32.mrb[0].mxu0
        %v528 = vadd.f32 %v457, %v527
        %v529 = vpop.f32.mrb[0].mxu0
        %530 = vdwg.mxu0
        %v531 = vmax.f32 %v528, 0.0
        %v532 = vsel %vm259, %v531, %v257
        %v533 = vld [vmem:[#allocation6 + $0x150] sm:$0xff]
        %v534 = vld [vmem:[#allocation6 + $0x158] sm:$0xff]
        %v535 = vld [vmem:[#allocation6 + $0x160] sm:$0xff]
        %v536 = vld [vmem:[#allocation6 + $0x168] sm:$0xff]
        %v537 = vld [vmem:[#allocation6 + $0x170] sm:$0xff]
        %v538 = vld [vmem:[#allocation6 + $0x178] sm:$0xff]
        %v539 = vld [vmem:[#allocation6 + $0x180] sm:$0xff]
        %v540 = vld [vmem:[#allocation6 + $0x188] sm:$0xff]
        %v541 = vld [vmem:[#allocation6 + $0x190] sm:$0xff]
        %v542 = vld [vmem:[#allocation6 + $0x198] sm:$0xff]
        %v543 = vld [vmem:[#allocation6 + $0x1a0] sm:$0xff]
        %v544 = vld [vmem:[#allocation6 + $0x1a8] sm:$0xff]
        %v545 = vld [vmem:[#allocation6 + $0x1b0] sm:$0xff]
        %v546 = vld [vmem:[#allocation6 + $0x1b8] sm:$0xff]
        %v547 = vld [vmem:[#allocation6 + $0x1c0] sm:$0xff]
        %v548 = vld [vmem:[#allocation6 + $0x1c8] sm:$0xff]
        %s549 = scalar_lea.vmem %s3, 2
        %v550 = vld [vmem:[%s549] ss:$8 sm:$0x3]
        %v552 = vlaneseq
        %v553 = vshrl.u32 %v552, 7
        %v554 = vsub.s32 0, %v553
        %v555 = vrot.slane %v550, %v554
        %v556 = vlaneseq
        %v557 = vshrl.u32 %v556, 7
        %v558 = vsub.s32 1, %v557
        %v559 = vrot.slane %v550, %v558
        %v563 = vsel %vm270, %v532, 0
        %565 = vmatprep.subr.mxu0 %v534
        %566 = vmatpush1.msra.mxu0 %v533
        %567 = vmatprep.subr.mxu0 %v536
        %568 = vmatpush1.msra.mxu0 %v535
        %569 = vmatprep.subr.mxu0 %v538
        %570 = vmatpush1.msra.mxu0 %v537
        %571 = vmatprep.subr.mxu0 %v540
        %572 = vmatpush1.msra.mxu0 %v539
        %573 = vmatprep.subr.mxu0 %v542
        %574 = vmatpush1.msra.mxu0 %v541
        %575 = vmatprep.subr.mxu0 %v544
        %576 = vmatpush1.msra.mxu0 %v543
        %577 = vmatprep.subr.mxu0 %v546
        %578 = vmatpush1.msra.mxu0 %v545
        %579 = vmatprep.subr.mxu0 %v548
        %580 = vmatpush1.msra.mxu0 %v547
        %581 = vmatprep.subr.mxu0 0.0
        %582 = vmatpush1.msra.mxu0 0.0
        %583 = vmatprep.subr.mxu0 0.0
        %584 = vmatpush1.msra.mxu0 0.0
        %585 = vmatprep.subr.mxu0 0.0
        %586 = vmatpush1.msra.mxu0 0.0
        %587 = vmatprep.subr.mxu0 0.0
        %588 = vmatpush1.msra.mxu0 0.0
        %589 = vmatprep.subr.mxu0 0.0
        %590 = vmatpush1.msra.mxu0 0.0
        %591 = vmatprep.subr.mxu0 0.0
        %592 = vmatpush1.msra.mxu0 0.0
        %593 = vmatprep.subr.mxu0 0.0
        %594 = vmatpush1.msra.mxu0 0.0
        %595 = vmatprep.subr.mxu0 0.0
        %596 = vmatpush1.msra.mxu0 0.0
        %597 = vmatprep.subr.mxu0 0.0
        %598 = vmatpush1.msra.mxu0 0.0
        %599 = vmatprep.subr.mxu0 0.0
        %600 = vmatpush1.msra.mxu0 0.0
        %601 = vmatprep.subr.mxu0 0.0
        %602 = vmatpush1.msra.mxu0 0.0
        %603 = vmatprep.subr.mxu0 0.0
        %604 = vmatpush1.msra.mxu0 0.0
        %605 = vmatprep.subr.mxu0 0.0
        %606 = vmatpush1.msra.mxu0 0.0
        %607 = vmatprep.subr.mxu0 0.0
        %608 = vmatpush1.msra.mxu0 0.0
        %609 = vmatprep.subr.mxu0 0.0
        %610 = vmatpush1.msra.mxu0 0.0
        %611 = vmatprep.subr.mxu0 0.0
        %612 = vmatpush1.msra.mxu0 0.0
        %613 = vmatprep.subr.mxu0 0.0
        %614 = vmatpush1.msra.mxu0 0.0
        %615 = vmatprep.subr.mxu0 0.0
        %616 = vmatpush1.msra.mxu0 0.0
        %617 = vmatprep.subr.mxu0 0.0
        %618 = vmatpush1.msra.mxu0 0.0
        %619 = vmatprep.subr.mxu0 0.0
        %620 = vmatpush1.msra.mxu0 0.0
        %621 = vmatprep.subr.mxu0 0.0
        %622 = vmatpush1.msra.mxu0 0.0
        %623 = vmatprep.subr.mxu0 0.0
        %624 = vmatpush1.msra.mxu0 0.0
        %625 = vmatprep.subr.mxu0 0.0
        %626 = vmatpush1.msra.mxu0 0.0
        %627 = vmatprep.subr.mxu0 0.0
        %628 = vmatpush1.msra.mxu0 0.0
        %629 = vmatprep.mubr.f32.mxu0 0.0
        %630 = vmatmul.mubr.f32.gmra.mrb[0].mxu0 %v563
        %v631 = vpop.f32.mrb[0].mxu0
        %v632 = vadd.f32 %v555, %v631
        %v633 = vpop.f32.mrb[0].mxu0
        %v634 = vadd.f32 %v559, %v633
        %635 = vdwg.mxu0
        %637 = vrot.lane.b32.xlu0 %v632, 32
        %v638 = vpop.permute.xlu0 %637
        %v640 = vadd.f32 %v632, %v638
        %v641 = vxor.u32 %v640, 2147483648
        %v642 = vmul.f32 %v641, 1.442695
        %v643 = vpow.pop %v642
        %v644 = vadd.f32 %v643, 1.0
        %v645 = vrcp.pop %v644
        %v646 = vmul.f32 1.0, %v645
        %648 = vrot.lane.b32.xlu0 %v634, 32
        %v649 = vpop.permute.xlu0 %648
        %v651 = vadd.f32 %v632, %v649
        %v652 = vxor.u32 %v651, 2147483648
        %v653 = vmul.f32 %v652, 1.442695
        %v654 = vpow.pop %v653
        %v655 = vadd.f32 %v654, 1.0
        %v656 = vrcp.pop %v655
        %v657 = vmul.f32 1.0, %v656
        %658 = vrot.lane.b32.xlu0 %v634, 96
        %v659 = vpop.permute.xlu0 %658
        %v661 = vmul.f32 %v646, %v659
        %663 = vrot.lane.b32.xlu0 %v661, 64
        %v664 = vpop.permute.xlu0 %663
        %v666 = vadd.f32 %v632, %v664
        %v667 = vtanh.pop %v666
        %v668 = vsub.f32 1.0, %v657
        %670 = vrot.lane.b32.xlu0 %v667, 96
        %v671 = vpop.permute.xlu0 %670
        %v673 = vmul.f32 %v668, %v671
        %v674 = vmul.f32 %v657, %v257
        %v675 = vadd.f32 %v673, %v674
        %677 = vrot.lane.b32.xlu0 %v675, 96
        %v678 = vpop.permute.xlu0 %677
        %v680 = vsel %vm259, %v678, 0.0
        %681 = vst [vmem:[#allocation2] sm:$0x1] %v680
        %v682 = vld [vmem:[#allocation6 + $0x1d0] sm:$0xff]
        %v683 = vld [vmem:[#allocation6 + $0x1e0] sm:$0xff]
        %v684 = vld [vmem:[#allocation6 + $0x1f0] sm:$0xff]
        %v685 = vld [vmem:[#allocation6 + $0x200] sm:$0xff]
        %v686 = vld [vmem:[%s3 + $0x3] ss:$0 sm:$0xff]
        %v687 = vsel %vm259, %v678, 0
        %689 = vmatprep.subr.mxu0 0.0
        %690 = vmatpush1.msra.mxu0 %v682
        %691 = vmatprep.subr.mxu0 0.0
        %692 = vmatpush1.msra.mxu0 %v683
        %693 = vmatprep.subr.mxu0 0.0
        %694 = vmatpush1.msra.mxu0 %v684
        %695 = vmatprep.subr.mxu0 0.0
        %696 = vmatpush1.msra.mxu0 %v685
        %697 = vmatprep.subr.mxu0 0.0
        %698 = vmatpush1.msra.mxu0 0.0
        %699 = vmatprep.subr.mxu0 0.0
        %700 = vmatpush1.msra.mxu0 0.0
        %701 = vmatprep.subr.mxu0 0.0
        %702 = vmatpush1.msra.mxu0 0.0
        %703 = vmatprep.subr.mxu0 0.0
        %704 = vmatpush1.msra.mxu0 0.0
        %705 = vmatprep.subr.mxu0 0.0
        %706 = vmatpush1.msra.mxu0 0.0
        %707 = vmatprep.subr.mxu0 0.0
        %708 = vmatpush1.msra.mxu0 0.0
        %709 = vmatprep.subr.mxu0 0.0
        %710 = vmatpush1.msra.mxu0 0.0
        %711 = vmatprep.subr.mxu0 0.0
        %712 = vmatpush1.msra.mxu0 0.0
        %713 = vmatprep.subr.mxu0 0.0
        %714 = vmatpush1.msra.mxu0 0.0
        %715 = vmatprep.subr.mxu0 0.0
        %716 = vmatpush1.msra.mxu0 0.0
        %717 = vmatprep.subr.mxu0 0.0
        %718 = vmatpush1.msra.mxu0 0.0
        %719 = vmatprep.subr.mxu0 0.0
        %720 = vmatpush1.msra.mxu0 0.0
        %721 = vmatprep.subr.mxu0 0.0
        %722 = vmatpush1.msra.mxu0 0.0
        %723 = vmatprep.subr.mxu0 0.0
        %724 = vmatpush1.msra.mxu0 0.0
        %725 = vmatprep.subr.mxu0 0.0
        %726 = vmatpush1.msra.mxu0 0.0
        %727 = vmatprep.subr.mxu0 0.0
        %728 = vmatpush1.msra.mxu0 0.0
        %729 = vmatprep.subr.mxu0 0.0
        %730 = vmatpush1.msra.mxu0 0.0
        %731 = vmatprep.subr.mxu0 0.0
        %732 = vmatpush1.msra.mxu0 0.0
        %733 = vmatprep.subr.mxu0 0.0
        %734 = vmatpush1.msra.mxu0 0.0
        %735 = vmatprep.subr.mxu0 0.0
        %736 = vmatpush1.msra.mxu0 0.0
        %737 = vmatprep.subr.mxu0 0.0
        %738 = vmatpush1.msra.mxu0 0.0
        %739 = vmatprep.subr.mxu0 0.0
        %740 = vmatpush1.msra.mxu0 0.0
        %741 = vmatprep.subr.mxu0 0.0
        %742 = vmatpush1.msra.mxu0 0.0
        %743 = vmatprep.subr.mxu0 0.0
        %744 = vmatpush1.msra.mxu0 0.0
        %745 = vmatprep.subr.mxu0 0.0
        %746 = vmatpush1.msra.mxu0 0.0
        %747 = vmatprep.subr.mxu0 0.0
        %748 = vmatpush1.msra.mxu0 0.0
        %749 = vmatprep.subr.mxu0 0.0
        %750 = vmatpush1.msra.mxu0 0.0
        %751 = vmatprep.subr.mxu0 0.0
        %752 = vmatpush1.msra.mxu0 0.0
        %753 = vmatprep.mubr.f32.mxu0 0.0
        %754 = vmatmul.mubr.f32.gmra.mrb[0].mxu0 %v687
        %v755 = vpop.f32.mrb[0].mxu0
        %v756 = vadd.f32 %v686, %v755
        %v757 = vpop.f32.mrb[0].mxu0
        %758 = vdwg.mxu0
        %vm759 = vcmp.lt.s32.totalorder %v250, 40
        %v760 = vsel %vm759, %v756, -1e+30
        %v761 = vsel %vm346, %v760, -inf
        %762 = vmax.xlane.f32.xlu0 %v761
        %v763 = vpop.xlane.xlu0 %762
        %v764 = vsub.f32 %v760, %v763
        %v765 = vmul.f32 %v764, 1.442695
        %v766 = vpow.pop %v765
        %v767 = vsel %vm346, %v766, 0.0
        %768 = vadd.xlane.f32.xlu0 %v767
        %v769 = vpop.xlane.xlu0 %768
        %v770 = vlog2.pop %v769
        %v771 = vmul.f32 %v770, 0.6931472
        %v772 = vsub.f32 %v764, %v771
        %v774 = vrot.slane %v680, 7
        %v777 = vrot.slane %v357, 6
        %v779 = vsel %vm346, %v772, %v774
        %vm780 = vcmask 1041408
        %v781 = vsel %vm780, %v779, %v777
        %782 = vst [vmem:[%s231] sm:$0x7] %v781
        %p783 = scmp.lt.s32.totalorder %s18, 5
        %s784 = scalar_select %p783, %s18, 5
        %s785 = smul.addr %s784, 4
        %s786 = scalar_lea.vmem %s5, %s785
        // Predicated region
        $region53: #{attn_decoder_forward_seq.1} parent=39 // pred_check
          %p787 = pneg %p141
        $region54: #{attn_decoder_forward_seq.1} parent=39 // pred_check_branch
          %789 = sbr.rel (%p787) target = $region56
        $region55: #{attn_decoder_forward_seq.1} parent=39 // pred_region
          _
        $region56: #{attn_decoder_forward_seq.1} parent=39 // pred_fallthru
          _
      $region40: #{attn_decoder_forward_seq.1} parent=5 // pred_fallthru
        _
      %p790 = scmp.le.s32.totalorder 2, %s13
      // Predicated region
      $region57: #{attn_decoder_forward_seq.1} parent=5 // pred_check
        %p791 = pneg %p790
      $region58: #{attn_decoder_forward_seq.1} parent=5 // pred_check_branch
        %793 = sbr.rel (%p791) target = $region60
      $region59: #{attn_decoder_forward_seq.1} parent=5 // pred_region
        %s794 = ssub.s32 %s13, 2
        // Predicated region
        $region61: #{attn_decoder_forward_seq.1} parent=59 // pred_check
          %p795 = pneg %p147
        $region62: #{attn_decoder_forward_seq.1} parent=59 // pred_check_branch
          %797 = sbr.rel (%p795) target = $region64
        $region63: #{attn_decoder_forward_seq.1} parent=59 // pred_region
          %p798 = scmp.lt.s32.totalorder %s19, 5
          %s799 = scalar_select %p798, %s19, 5
          %s800 = smul.addr %s799, 4
          %s801 = scalar_lea.vmem %s5, %s800
        $region64: #{attn_decoder_forward_seq.1} parent=59 // pred_fallthru
          _
      $region60: #{attn_decoder_forward_seq.1} parent=5 // pred_fallthru
        _
    $region6: #{attn_decoder_forward_seq.1} parent=1 // loop_footer
      %s17 = sadd.s32 1, %s13
    $region7: #{attn_decoder_forward_seq.1} parent=1 // loop_footer_branch
      %12 = sbr.rel target = $region3
    $region8: #{attn_decoder_forward_seq.1} parent=1 // loop_exit
      _
    %802 = vsyncpa [#allocation4], 1
    %s803 = scalar_lea.sflag [#allocation4], 1
    %804 = vsyncpa %s803, 1
    %805 = vsyncpa [#allocation5], 1
    %s806 = scalar_lea.sflag [#allocation5], 1
    %807 = vsyncpa %s806, 1

</llo_original>
